<compile_context>
chip_gen: v5e
topology: v5e:2x2
jax: 0.10.0
libtpu: 0.0.40
codegen_flags: <defaults>
</compile_context>

<pallas_src>
import functools

import jax
import jax.numpy as jnp
from jax.experimental import pallas as pl
from jax.experimental.pallas import tpu as pltpu  # noqa: F401  (train-mode dropout would use pltpu.prng_*)


def _round_up(n, m):
    return ((n + m - 1) // m) * m


def conv_block_kernel(x_ref, w_ref, gb_ref, o_ref, *, n_stats, r_stats_pad, r_out_pad):
    """Fused Conv2d(3x3, s=1, p=0) -> BatchNorm2d(train) -> LeakyReLU -> MaxPool2d(3,2).

    x_ref : (r_stats_pad + 9*r_out_pad, KH*KW*Ci) im2col slab
            rows [0, r_stats_pad)        every conv output position once (BN stats;
                                         zero-padded rows contribute 0 to the sums)
            rows [r_stats_pad, ...)      9 blocks of r_out_pad rows, one per pool tap
                                         (ph, pw), each ordered (n, i, j)
    w_ref : (KH*KW*Ci, Co) conv weight, row order (kh, kw, ci) matching im2col columns
    gb_ref: (2, Co)        row 0 = gamma, row 1 = beta
    o_ref : (r_out_pad, Co) pooled output rows ordered (n, i, j)
    """
    # --- Conv2d: ONE dense im2col matmul on the MXU (contraction depth = KH*KW*Ci).
    acc = jnp.dot(x_ref[...], w_ref[...], preferred_element_type=jnp.float32)

    # --- BatchNorm2d (training-mode batch statistics, eps=1e-5, biased variance).
    # Conv bias is intentionally absent: a per-channel constant is cancelled exactly
    # by the batch-mean subtraction.  Zero padding rows add 0 to both sums.
    stats = acc[0:r_stats_pad]                                  # sublane-aligned slice
    inv_cnt = 1.0 / float(n_stats)
    mean = jnp.sum(stats, axis=0, keepdims=True) * inv_cnt      # (1, Co)
    var = jnp.sum(stats * stats, axis=0, keepdims=True) * inv_cnt - mean * mean
    var = jnp.maximum(var, 0.0)                                 # one-pass cancellation guard
    scale = gb_ref[0:1, :] * jax.lax.rsqrt(var + 1e-5)
    shift = gb_ref[1:2, :] - mean * scale

    # Affine only on the rows the pooling actually consumes (offset is a multiple of 8).
    y = acc[r_stats_pad:r_stats_pad + 9 * r_out_pad] * scale + shift

    # --- MaxPool2d(3, 2): the 9 pool taps are contiguous, sublane-aligned row blocks,
    # so pooling is 8 elementwise maxima -- no shifted slices, rolls or gathers.
    p = y[0:r_out_pad]
    for t in range(1, 9):
        p = jnp.maximum(p, y[t * r_out_pad:(t + 1) * r_out_pad])

    # --- LeakyReLU(0.01): monotonic, so applying it after the max is exact and cheaper.
    p = jnp.maximum(p, 0.01 * p)

    # TODO(synk): Dropout(p=0.3) is stochastic in train mode; eval-mode identity used
    # here (train mode would need pltpu.prng_seed + pltpu.prng_random_bits + 1/(1-p)).
    o_ref[...] = p.astype(o_ref.dtype)


def conv_block_forward(x_nchw, w_oihw, bias, gamma, beta):
    N, Ci, H, W = x_nchw.shape
    Co, _, KH, KW = w_oihw.shape
    Ho, Wo = H - KH + 1, W - KW + 1
    Hp, Wp = (Ho - 3) // 2 + 1, (Wo - 3) // 2 + 1
    K = KH * KW * Ci

    # Conv bias is cancelled exactly by training-mode BatchNorm, never enters the kernel.
    del bias

    # ---- Layout plumbing only (im2col patch extraction), NCHW -> channels-last -----
    x_nhwc = jnp.transpose(x_nchw, (0, 2, 3, 1)).astype(jnp.float32)
    # patches[n, ho, wo, kh, kw, ci] = x_nhwc[n, ho+kh, wo+kw, ci]
    patches = jnp.stack(
        [jnp.stack([x_nhwc[:, kh:kh + Ho, kw:kw + Wo, :] for kw in range(KW)], axis=3)
         for kh in range(KH)], axis=3)                           # (N, Ho, Wo, KH, KW, Ci)

    # Block 1: every conv output position exactly once (BatchNorm statistics).
    r_stats = N * Ho * Wo
    r_stats_pad = _round_up(r_stats, 8)
    cols_stats = patches.reshape(r_stats, K)
    cols_stats = jnp.pad(cols_stats, ((0, r_stats_pad - r_stats), (0, 0)))

    # Block 2: one row block per MaxPool tap (ph, pw); rows ordered (n, i, j).
    r_out = N * Hp * Wp
    r_out_pad = _round_up(r_out, 8)
    pool_taps = []
    for ph in range(3):
        for pw in range(3):
            blk = patches[:, ph:ph + 2 * Hp:2, pw:pw + 2 * Wp:2]  # (N, Hp, Wp, KH, KW, Ci)
            blk = blk.reshape(r_out, K)
            pool_taps.append(jnp.pad(blk, ((0, r_out_pad - r_out), (0, 0))))
    x_cols = jnp.concatenate([cols_stats] + pool_taps, axis=0)   # (r_stats_pad+9*r_out_pad, K)

    # Weight rows ordered (kh, kw, ci) to match im2col columns; gamma/beta fused into
    # one (2, Co) array to trim per-input DMA overhead (3 input DMAs total).
    w_mat = jnp.transpose(w_oihw, (2, 3, 1, 0)).reshape(K, Co).astype(jnp.float32)
    gb = jnp.stack([gamma.astype(jnp.float32), beta.astype(jnp.float32)], axis=0)

    out_flat = pl.pallas_call(
        functools.partial(conv_block_kernel, n_stats=r_stats,
                          r_stats_pad=r_stats_pad, r_out_pad=r_out_pad),
        out_shape=jax.ShapeDtypeStruct((r_out_pad, Co), jnp.float32),
    )(x_cols, w_mat, gb)

    out = out_flat[:r_out].reshape(N, Hp, Wp, Co)
    return jnp.transpose(out, (0, 3, 1, 2))                      # NCHW like PyTorch


def reference_forward(x, w, b, gamma, beta):
    y = jax.lax.conv_general_dilated(
        x, w, window_strides=(1, 1), padding="VALID",
        dimension_numbers=("NCHW", "OIHW", "NCHW"))
    y = y + b.reshape(1, -1, 1, 1)
    mean = jnp.mean(y, axis=(0, 2, 3), keepdims=True)
    var = jnp.mean((y - mean) ** 2, axis=(0, 2, 3), keepdims=True)
    y = (y - mean) / jnp.sqrt(var + 1e-5)
    y = y * gamma.reshape(1, -1, 1, 1) + beta.reshape(1, -1, 1, 1)
    y = jnp.where(y >= 0, y, 0.01 * y)
    y = jax.lax.reduce_window(y, -jnp.inf, jax.lax.max,
                              (1, 1, 3, 3), (1, 1, 2, 2), "VALID")
    return y


if __name__ == "__main__":
    # Small shapes consistent with ConvBlock(in_chan=4, out_chan=8, k=3, stride=1)
    N, Cin, Cout, H, W, K = 2, 4, 8, 16, 16, 3

    key = jax.random.PRNGKey(0)
    kx, kw, kb = jax.random.split(key, 3)

    x = jax.random.normal(kx, (N, Cin, H, W), dtype=jnp.float32)
    bound = 1.0 / (Cin * K * K) ** 0.5              # PyTorch Conv2d default init range
    w = jax.random.uniform(kw, (Cout, Cin, K, K), minval=-bound, maxval=bound,
                           dtype=jnp.float32)
    b = jax.random.uniform(kb, (Cout,), minval=-bound, maxval=bound,
                           dtype=jnp.float32)
    gamma = jnp.ones((Cout,), jnp.float32)          # BatchNorm2d default init
    beta = jnp.zeros((Cout,), jnp.float32)

    out = conv_block_forward(x, w, b, gamma, beta)
    out = jax.block_until_ready(out)

    ref = reference_forward(x, w, b, gamma, beta)
    assert out.shape == ref.shape == (N, Cout, 6, 6), out.shape
    assert jnp.allclose(out, ref, rtol=1e-4, atol=1e-4), "mismatch vs reference"

    print("KERNEL_OK")
</pallas_src>

<mosaic_0001>
module attributes {stable_mosaic.version = 11 : i64} {
  func.func @conv_block_kernel(%arg0: memref<1040x36xf32, #tpu.memory_space<vmem>>, %arg1: memref<36x8xf32, #tpu.memory_space<vmem>>, %arg2: memref<2x8xf32, #tpu.memory_space<vmem>>, %arg3: memref<72x8xf32, #tpu.memory_space<vmem>>) attributes {dimension_semantics = [], scalar_prefetch = 0 : i64, scratch_operands = 0 : i64, tpu.core_type = #tpu.core_type<tc>} {
    %c0 = arith.constant 0 : index
    %c0_0 = arith.constant 0 : index
    %0 = vector.load %arg0[%c0, %c0_0] : memref<1040x36xf32, #tpu.memory_space<vmem>>, vector<1040x36xf32>
    %c0_1 = arith.constant 0 : index
    %c0_2 = arith.constant 0 : index
    %1 = vector.load %arg1[%c0_1, %c0_2] : memref<36x8xf32, #tpu.memory_space<vmem>>, vector<36x8xf32>
    %cst = arith.constant dense<0.000000e+00> : vector<1040x8xf32>
    %2 = tpu.matmul %0, %1, %cst {dimension_numbers = #tpu.dot_dimension_numbers<[1], [0], [0], [1], [0, 0, 1, 1], [], []>} : vector<1040x36xf32>, vector<36x8xf32>, vector<1040x8xf32> -> vector<1040x8xf32>
    %3 = vector.extract_strided_slice %2 {offsets = [0, 0], sizes = [392, 8], strides = [1, 1]} : vector<1040x8xf32> to vector<392x8xf32>
    %cst_3 = arith.constant dense<0.000000e+00> : vector<8xf32>
    %4 = vector.multi_reduction <add>, %3, %cst_3 [0] : vector<392x8xf32> to vector<8xf32>
    %5 = vector.shape_cast %4 : vector<8xf32> to vector<1x8xf32>
    %cst_4 = arith.constant 0.00255102036 : f32
    %6 = vector.broadcast %cst_4 : f32 to vector<1x8xf32>
    %7 = arith.mulf %5, %6 : vector<1x8xf32>
    %8 = arith.mulf %3, %3 : vector<392x8xf32>
    %cst_5 = arith.constant dense<0.000000e+00> : vector<8xf32>
    %9 = vector.multi_reduction <add>, %8, %cst_5 [0] : vector<392x8xf32> to vector<8xf32>
    %10 = vector.shape_cast %9 : vector<8xf32> to vector<1x8xf32>
    %cst_6 = arith.constant 0.00255102036 : f32
    %11 = vector.broadcast %cst_6 : f32 to vector<1x8xf32>
    %12 = arith.mulf %10, %11 : vector<1x8xf32>
    %13 = arith.mulf %7, %7 : vector<1x8xf32>
    %14 = arith.subf %12, %13 : vector<1x8xf32>
    %cst_7 = arith.constant 0.000000e+00 : f32
    %15 = vector.broadcast %cst_7 : f32 to vector<1x8xf32>
    %16 = arith.maximumf %14, %15 : vector<1x8xf32>
    %c0_8 = arith.constant 0 : index
    %c0_9 = arith.constant 0 : index
    %17 = vector.load %arg2[%c0_8, %c0_9] : memref<2x8xf32, #tpu.memory_space<vmem>>, vector<1x8xf32>
    %cst_10 = arith.constant 9.99999974E-6 : f32
    %18 = vector.broadcast %cst_10 : f32 to vector<1x8xf32>
    %19 = arith.addf %16, %18 : vector<1x8xf32>
    %20 = math.rsqrt %19 : vector<1x8xf32>
    %21 = arith.mulf %17, %20 : vector<1x8xf32>
    %c1 = arith.constant 1 : index
    %c0_11 = arith.constant 0 : index
    %22 = vector.load %arg2[%c1, %c0_11] : memref<2x8xf32, #tpu.memory_space<vmem>>, vector<1x8xf32>
    %23 = arith.mulf %7, %21 : vector<1x8xf32>
    %24 = arith.subf %22, %23 : vector<1x8xf32>
    %25 = vector.extract_strided_slice %2 {offsets = [392, 0], sizes = [648, 8], strides = [1, 1]} : vector<1040x8xf32> to vector<648x8xf32>
    %26 = vector.broadcast %21 : vector<1x8xf32> to vector<648x8xf32>
    %27 = arith.mulf %25, %26 : vector<648x8xf32>
    %28 = vector.broadcast %24 : vector<1x8xf32> to vector<648x8xf32>
    %29 = arith.addf %27, %28 : vector<648x8xf32>
    %30 = vector.extract_strided_slice %29 {offsets = [0, 0], sizes = [72, 8], strides = [1, 1]} : vector<648x8xf32> to vector<72x8xf32>
    %31 = vector.extract_strided_slice %29 {offsets = [72, 0], sizes = [72, 8], strides = [1, 1]} : vector<648x8xf32> to vector<72x8xf32>
    %32 = arith.maximumf %30, %31 : vector<72x8xf32>
    %33 = vector.extract_strided_slice %29 {offsets = [144, 0], sizes = [72, 8], strides = [1, 1]} : vector<648x8xf32> to vector<72x8xf32>
    %34 = arith.maximumf %32, %33 : vector<72x8xf32>
    %35 = vector.extract_strided_slice %29 {offsets = [216, 0], sizes = [72, 8], strides = [1, 1]} : vector<648x8xf32> to vector<72x8xf32>
    %36 = arith.maximumf %34, %35 : vector<72x8xf32>
    %37 = vector.extract_strided_slice %29 {offsets = [288, 0], sizes = [72, 8], strides = [1, 1]} : vector<648x8xf32> to vector<72x8xf32>
    %38 = arith.maximumf %36, %37 : vector<72x8xf32>
    %39 = vector.extract_strided_slice %29 {offsets = [360, 0], sizes = [72, 8], strides = [1, 1]} : vector<648x8xf32> to vector<72x8xf32>
    %40 = arith.maximumf %38, %39 : vector<72x8xf32>
    %41 = vector.extract_strided_slice %29 {offsets = [432, 0], sizes = [72, 8], strides = [1, 1]} : vector<648x8xf32> to vector<72x8xf32>
    %42 = arith.maximumf %40, %41 : vector<72x8xf32>
    %43 = vector.extract_strided_slice %29 {offsets = [504, 0], sizes = [72, 8], strides = [1, 1]} : vector<648x8xf32> to vector<72x8xf32>
    %44 = arith.maximumf %42, %43 : vector<72x8xf32>
    %45 = vector.extract_strided_slice %29 {offsets = [576, 0], sizes = [72, 8], strides = [1, 1]} : vector<648x8xf32> to vector<72x8xf32>
    %46 = arith.maximumf %44, %45 : vector<72x8xf32>
    %cst_12 = arith.constant 0.00999999977 : f32
    %47 = vector.broadcast %cst_12 : f32 to vector<72x8xf32>
    %48 = arith.mulf %47, %46 : vector<72x8xf32>
    %49 = arith.maximumf %46, %48 : vector<72x8xf32>
    %c0_13 = arith.constant 0 : index
    %c0_14 = arith.constant 0 : index
    %50 = vector.load %arg3[%c0_13, %c0_14] : memref<72x8xf32, #tpu.memory_space<vmem>>, vector<72x8xf32>
    tpu.vector_store %arg3[%c0_13, %c0_14], %49 {strides = array<i32>} : memref<72x8xf32, #tpu.memory_space<vmem>>, vector<72x8xf32>,
    return
  }
}

</mosaic_0001>

<llo_original>
// kernel: tpu_custom_call.1
$region0: #{tpu_custom_call.1}
  #allocation0 [shape = 'u32[]', space=smem, size = 0x4, offset = 0x4, fixed_abs, tag = 'smem constant byte address 0x4 - core index']
  #allocation1 [shape = 'u32[72,128]{1,0:T(1,128)}', space=vmem, size = 0x9000, scoped, tag = 'internal scratch']
  %s0 = inlined_call_operand.vmem [shape: f32[1040,36], index: 0, kind: input, shape index: {}]
  %s1 = inlined_call_operand.vmem [shape: f32[36,8], index: 1, kind: input, shape index: {}]
  %s2 = inlined_call_operand.vmem [shape: f32[2,8], index: 2, kind: input, shape index: {}]
  %s3 = inlined_call_operand.vmem [shape: f32[72,8], index: 3, kind: output, shape index: {}]
  %s4 = sld [smem:[#allocation0]]
  $region22: #{tpu_custom_call.1} parent=0
    _
  %s6 = ssub.s32 1, %s4
  %s7 = scalar_select 0, %s6, %s4
  // Predicated region
  $region2: #{tpu_custom_call.1} parent=0 // pred_check
    _
  $region3: #{tpu_custom_call.1} parent=0 // pred_check_branch
    %9 = sbr.rel (0) target = $region5
  $region4: #{tpu_custom_call.1} parent=0 // pred_region
    _
  $region5: #{tpu_custom_call.1} parent=0 // pred_fallthru
    _
  // Predicated region
  $region6: #{tpu_custom_call.1} parent=0 // pred_check
    _
  $region7: #{tpu_custom_call.1} parent=0 // pred_check_branch
    %11 = sbr.rel (0) target = $region9
  $region8: #{tpu_custom_call.1} parent=0 // pred_region
    _
  $region9: #{tpu_custom_call.1} parent=0 // pred_fallthru
    _
  // Predicated region
  $region10: #{tpu_custom_call.1} parent=0 // pred_check
    _
  $region11: #{tpu_custom_call.1} parent=0 // pred_check_branch
    %13 = sbr.rel (0) target = $region13
  $region12: #{tpu_custom_call.1} parent=0 // pred_region
    _
  $region13: #{tpu_custom_call.1} parent=0 // pred_fallthru
    _
  %v14 = vld [vmem:[%s0] sm:$0xff]
  %v15 = vld [vmem:[%s0 + $0x8] sm:$0xff]
  %v16 = vld [vmem:[%s0 + $0x10] sm:$0xff]
  %v17 = vld [vmem:[%s0 + $0x18] sm:$0xff]
  %v18 = vld [vmem:[%s0 + $0x20] sm:$0xff]
  %v19 = vld [vmem:[%s0 + $0x28] sm:$0xff]
  %v20 = vld [vmem:[%s0 + $0x30] sm:$0xff]
  %v21 = vld [vmem:[%s0 + $0x38] sm:$0xff]
  %v22 = vld [vmem:[%s0 + $0x40] sm:$0xff]
  %v23 = vld [vmem:[%s0 + $0x48] sm:$0xff]
  %v24 = vld [vmem:[%s0 + $0x50] sm:$0xff]
  %v25 = vld [vmem:[%s0 + $0x58] sm:$0xff]
  %v26 = vld [vmem:[%s0 + $0x60] sm:$0xff]
  %v27 = vld [vmem:[%s0 + $0x68] sm:$0xff]
  %v28 = vld [vmem:[%s0 + $0x70] sm:$0xff]
  %v29 = vld [vmem:[%s0 + $0x78] sm:$0xff]
  %v30 = vld [vmem:[%s0 + $0x80] sm:$0xff]
  %v31 = vld [vmem:[%s0 + $0x88] sm:$0xff]
  %v32 = vld [vmem:[%s0 + $0x90] sm:$0xff]
  %v33 = vld [vmem:[%s0 + $0x98] sm:$0xff]
  %v34 = vld [vmem:[%s0 + $0xa0] sm:$0xff]
  %v35 = vld [vmem:[%s0 + $0xa8] sm:$0xff]
  %v36 = vld [vmem:[%s0 + $0xb0] sm:$0xff]
  %v37 = vld [vmem:[%s0 + $0xb8] sm:$0xff]
  %v38 = vld [vmem:[%s0 + $0xc0] sm:$0xff]
  %v39 = vld [vmem:[%s0 + $0xc8] sm:$0xff]
  %v40 = vld [vmem:[%s0 + $0xd0] sm:$0xff]
  %v41 = vld [vmem:[%s0 + $0xd8] sm:$0xff]
  %v42 = vld [vmem:[%s0 + $0xe0] sm:$0xff]
  %v43 = vld [vmem:[%s0 + $0xe8] sm:$0xff]
  %v44 = vld [vmem:[%s0 + $0xf0] sm:$0xff]
  %v45 = vld [vmem:[%s0 + $0xf8] sm:$0xff]
  %v46 = vld [vmem:[%s0 + $0x100] sm:$0xff]
  %v47 = vld [vmem:[%s0 + $0x108] sm:$0xff]
  %v48 = vld [vmem:[%s0 + $0x110] sm:$0xff]
  %v49 = vld [vmem:[%s0 + $0x118] sm:$0xff]
  %v50 = vld [vmem:[%s0 + $0x120] sm:$0xff]
  %v51 = vld [vmem:[%s0 + $0x128] sm:$0xff]
  %v52 = vld [vmem:[%s0 + $0x130] sm:$0xff]
  %v53 = vld [vmem:[%s0 + $0x138] sm:$0xff]
  %v54 = vld [vmem:[%s0 + $0x140] sm:$0xff]
  %v55 = vld [vmem:[%s0 + $0x148] sm:$0xff]
  %v56 = vld [vmem:[%s0 + $0x150] sm:$0xff]
  %v57 = vld [vmem:[%s0 + $0x158] sm:$0xff]
  %v58 = vld [vmem:[%s0 + $0x160] sm:$0xff]
  %v59 = vld [vmem:[%s0 + $0x168] sm:$0xff]
  %v60 = vld [vmem:[%s0 + $0x170] sm:$0xff]
  %v61 = vld [vmem:[%s0 + $0x178] sm:$0xff]
  %v62 = vld [vmem:[%s0 + $0x180] sm:$0xff]
  %v63 = vld [vmem:[%s0 + $0x188] sm:$0xff]
  %v64 = vld [vmem:[%s0 + $0x190] sm:$0xff]
  %v65 = vld [vmem:[%s0 + $0x198] sm:$0xff]
  %v66 = vld [vmem:[%s0 + $0x1a0] sm:$0xff]
  %v67 = vld [vmem:[%s0 + $0x1a8] sm:$0xff]
  %v68 = vld [vmem:[%s0 + $0x1b0] sm:$0xff]
  %v69 = vld [vmem:[%s0 + $0x1b8] sm:$0xff]
  %v70 = vld [vmem:[%s0 + $0x1c0] sm:$0xff]
  %v71 = vld [vmem:[%s0 + $0x1c8] sm:$0xff]
  %v72 = vld [vmem:[%s0 + $0x1d0] sm:$0xff]
  %v73 = vld [vmem:[%s0 + $0x1d8] sm:$0xff]
  %v74 = vld [vmem:[%s0 + $0x1e0] sm:$0xff]
  %v75 = vld [vmem:[%s0 + $0x1e8] sm:$0xff]
  %v76 = vld [vmem:[%s0 + $0x1f0] sm:$0xff]
  %v77 = vld [vmem:[%s0 + $0x1f8] sm:$0xff]
  %v78 = vld [vmem:[%s0 + $0x200] sm:$0xff]
  %v79 = vld [vmem:[%s0 + $0x208] sm:$0xff]
  %v80 = vld [vmem:[%s0 + $0x210] sm:$0xff]
  %v81 = vld [vmem:[%s0 + $0x218] sm:$0xff]
  %v82 = vld [vmem:[%s0 + $0x220] sm:$0xff]
  %v83 = vld [vmem:[%s0 + $0x228] sm:$0xff]
  %v84 = vld [vmem:[%s0 + $0x230] sm:$0xff]
  %v85 = vld [vmem:[%s0 + $0x238] sm:$0xff]
  %v86 = vld [vmem:[%s0 + $0x240] sm:$0xff]
  %v87 = vld [vmem:[%s0 + $0x248] sm:$0xff]
  %v88 = vld [vmem:[%s0 + $0x250] sm:$0xff]
  %v89 = vld [vmem:[%s0 + $0x258] sm:$0xff]
  %v90 = vld [vmem:[%s0 + $0x260] sm:$0xff]
  %v91 = vld [vmem:[%s0 + $0x268] sm:$0xff]
  %v92 = vld [vmem:[%s0 + $0x270] sm:$0xff]
  %v93 = vld [vmem:[%s0 + $0x278] sm:$0xff]
  %v94 = vld [vmem:[%s0 + $0x280] sm:$0xff]
  %v95 = vld [vmem:[%s0 + $0x288] sm:$0xff]
  %v96 = vld [vmem:[%s0 + $0x290] sm:$0xff]
  %v97 = vld [vmem:[%s0 + $0x298] sm:$0xff]
  %v98 = vld [vmem:[%s0 + $0x2a0] sm:$0xff]
  %v99 = vld [vmem:[%s0 + $0x2a8] sm:$0xff]
  %v100 = vld [vmem:[%s0 + $0x2b0] sm:$0xff]
  %v101 = vld [vmem:[%s0 + $0x2b8] sm:$0xff]
  %v102 = vld [vmem:[%s0 + $0x2c0] sm:$0xff]
  %v103 = vld [vmem:[%s0 + $0x2c8] sm:$0xff]
  %v104 = vld [vmem:[%s0 + $0x2d0] sm:$0xff]
  %v105 = vld [vmem:[%s0 + $0x2d8] sm:$0xff]
  %v106 = vld [vmem:[%s0 + $0x2e0] sm:$0xff]
  %v107 = vld [vmem:[%s0 + $0x2e8] sm:$0xff]
  %v108 = vld [vmem:[%s0 + $0x2f0] sm:$0xff]
  %v109 = vld [vmem:[%s0 + $0x2f8] sm:$0xff]
  %v110 = vld [vmem:[%s0 + $0x300] sm:$0xff]
  %v111 = vld [vmem:[%s0 + $0x308] sm:$0xff]
  %v112 = vld [vmem:[%s0 + $0x310] sm:$0xff]
  %v113 = vld [vmem:[%s0 + $0x318] sm:$0xff]
  %v114 = vld [vmem:[%s0 + $0x320] sm:$0xff]
  %v115 = vld [vmem:[%s0 + $0x328] sm:$0xff]
  %v116 = vld [vmem:[%s0 + $0x330] sm:$0xff]
  %v117 = vld [vmem:[%s0 + $0x338] sm:$0xff]
  %v118 = vld [vmem:[%s0 + $0x340] sm:$0xff]
  %v119 = vld [vmem:[%s0 + $0x348] sm:$0xff]
  %v120 = vld [vmem:[%s0 + $0x350] sm:$0xff]
  %v121 = vld [vmem:[%s0 + $0x358] sm:$0xff]
  %v122 = vld [vmem:[%s0 + $0x360] sm:$0xff]
  %v123 = vld [vmem:[%s0 + $0x368] sm:$0xff]
  %v124 = vld [vmem:[%s0 + $0x370] sm:$0xff]
  %v125 = vld [vmem:[%s0 + $0x378] sm:$0xff]
  %v126 = vld [vmem:[%s0 + $0x380] sm:$0xff]
  %v127 = vld [vmem:[%s0 + $0x388] sm:$0xff]
  %v128 = vld [vmem:[%s0 + $0x390] sm:$0xff]
  %v129 = vld [vmem:[%s0 + $0x398] sm:$0xff]
  %v130 = vld [vmem:[%s0 + $0x3a0] sm:$0xff]
  %v131 = vld [vmem:[%s0 + $0x3a8] sm:$0xff]
  %v132 = vld [vmem:[%s0 + $0x3b0] sm:$0xff]
  %v133 = vld [vmem:[%s0 + $0x3b8] sm:$0xff]
  %v134 = vld [vmem:[%s0 + $0x3c0] sm:$0xff]
  %v135 = vld [vmem:[%s0 + $0x3c8] sm:$0xff]
  %v136 = vld [vmem:[%s0 + $0x3d0] sm:$0xff]
  %v137 = vld [vmem:[%s0 + $0x3d8] sm:$0xff]
  %v138 = vld [vmem:[%s0 + $0x3e0] sm:$0xff]
  %v139 = vld [vmem:[%s0 + $0x3e8] sm:$0xff]
  %v140 = vld [vmem:[%s0 + $0x3f0] sm:$0xff]
  %v141 = vld [vmem:[%s0 + $0x3f8] sm:$0xff]
  %v142 = vld [vmem:[%s0 + $0x400] sm:$0xff]
  %v143 = vld [vmem:[%s0 + $0x408] sm:$0xff]
  %v144 = vld [vmem:[%s1] sm:$0xff]
  %v145 = vld [vmem:[%s1 + $0x8] sm:$0xff]
  %v146 = vld [vmem:[%s1 + $0x10] sm:$0xff]
  %v147 = vld [vmem:[%s1 + $0x18] sm:$0xff]
  %v148 = vld [vmem:[%s1 + $0x20] sm:$0xf]
  %vm149 = vcmask 293888
  %v151 = vsel %vm149, %v14, 0
  %v154 = vsel %vm149, %v15, 0
  %v157 = vsel %vm149, %v16, 0
  %v160 = vsel %vm149, %v17, 0
  %v163 = vsel %vm149, %v18, 0
  %v166 = vsel %vm149, %v19, 0
  %v169 = vsel %vm149, %v20, 0
  %v172 = vsel %vm149, %v21, 0
  %v175 = vsel %vm149, %v22, 0
  %v178 = vsel %vm149, %v23, 0
  %v181 = vsel %vm149, %v24, 0
  %v184 = vsel %vm149, %v25, 0
  %v187 = vsel %vm149, %v26, 0
  %v190 = vsel %vm149, %v27, 0
  %v193 = vsel %vm149, %v28, 0
  %v196 = vsel %vm149, %v29, 0
  %v199 = vsel %vm149, %v30, 0
  %v202 = vsel %vm149, %v31, 0
  %v205 = vsel %vm149, %v32, 0
  %v208 = vsel %vm149, %v33, 0
  %v211 = vsel %vm149, %v34, 0
  %v214 = vsel %vm149, %v35, 0
  %v217 = vsel %vm149, %v36, 0
  %v220 = vsel %vm149, %v37, 0
  %v223 = vsel %vm149, %v38, 0
  %v226 = vsel %vm149, %v39, 0
  %v229 = vsel %vm149, %v40, 0
  %v232 = vsel %vm149, %v41, 0
  %v235 = vsel %vm149, %v42, 0
  %v238 = vsel %vm149, %v43, 0
  %v241 = vsel %vm149, %v44, 0
  %v244 = vsel %vm149, %v45, 0
  %v247 = vsel %vm149, %v46, 0
  %v250 = vsel %vm149, %v47, 0
  %v253 = vsel %vm149, %v48, 0
  %v256 = vsel %vm149, %v49, 0
  %v259 = vsel %vm149, %v50, 0
  %v262 = vsel %vm149, %v51, 0
  %v265 = vsel %vm149, %v52, 0
  %v268 = vsel %vm149, %v53, 0
  %v271 = vsel %vm149, %v54, 0
  %v274 = vsel %vm149, %v55, 0
  %v277 = vsel %vm149, %v56, 0
  %v280 = vsel %vm149, %v57, 0
  %v283 = vsel %vm149, %v58, 0
  %v286 = vsel %vm149, %v59, 0
  %v289 = vsel %vm149, %v60, 0
  %v292 = vsel %vm149, %v61, 0
  %v295 = vsel %vm149, %v62, 0
  %v298 = vsel %vm149, %v63, 0
  %v301 = vsel %vm149, %v64, 0
  %v304 = vsel %vm149, %v65, 0
  %v307 = vsel %vm149, %v66, 0
  %v310 = vsel %vm149, %v67, 0
  %v313 = vsel %vm149, %v68, 0
  %v316 = vsel %vm149, %v69, 0
  %v319 = vsel %vm149, %v70, 0
  %v322 = vsel %vm149, %v71, 0
  %v325 = vsel %vm149, %v72, 0
  %v328 = vsel %vm149, %v73, 0
  %v331 = vsel %vm149, %v74, 0
  %v334 = vsel %vm149, %v75, 0
  %v337 = vsel %vm149, %v76, 0
  %v340 = vsel %vm149, %v77, 0
  %v343 = vsel %vm149, %v78, 0
  %v346 = vsel %vm149, %v79, 0
  %v349 = vsel %vm149, %v80, 0
  %v352 = vsel %vm149, %v81, 0
  %v355 = vsel %vm149, %v82, 0
  %v358 = vsel %vm149, %v83, 0
  %v361 = vsel %vm149, %v84, 0
  %v364 = vsel %vm149, %v85, 0
  %v367 = vsel %vm149, %v86, 0
  %v370 = vsel %vm149, %v87, 0
  %v373 = vsel %vm149, %v88, 0
  %v376 = vsel %vm149, %v89, 0
  %v379 = vsel %vm149, %v90, 0
  %v382 = vsel %vm149, %v91, 0
  %v385 = vsel %vm149, %v92, 0
  %v388 = vsel %vm149, %v93, 0
  %v391 = vsel %vm149, %v94, 0
  %v394 = vsel %vm149, %v95, 0
  %v397 = vsel %vm149, %v96, 0
  %v400 = vsel %vm149, %v97, 0
  %v403 = vsel %vm149, %v98, 0
  %v406 = vsel %vm149, %v99, 0
  %v409 = vsel %vm149, %v100, 0
  %v412 = vsel %vm149, %v101, 0
  %v415 = vsel %vm149, %v102, 0
  %v418 = vsel %vm149, %v103, 0
  %v421 = vsel %vm149, %v104, 0
  %v424 = vsel %vm149, %v105, 0
  %v427 = vsel %vm149, %v106, 0
  %v430 = vsel %vm149, %v107, 0
  %v433 = vsel %vm149, %v108, 0
  %v436 = vsel %vm149, %v109, 0
  %v439 = vsel %vm149, %v110, 0
  %v442 = vsel %vm149, %v111, 0
  %v445 = vsel %vm149, %v112, 0
  %v448 = vsel %vm149, %v113, 0
  %v451 = vsel %vm149, %v114, 0
  %v454 = vsel %vm149, %v115, 0
  %v457 = vsel %vm149, %v116, 0
  %v460 = vsel %vm149, %v117, 0
  %v463 = vsel %vm149, %v118, 0
  %v466 = vsel %vm149, %v119, 0
  %v469 = vsel %vm149, %v120, 0
  %v472 = vsel %vm149, %v121, 0
  %v475 = vsel %vm149, %v122, 0
  %v478 = vsel %vm149, %v123, 0
  %v481 = vsel %vm149, %v124, 0
  %v484 = vsel %vm149, %v125, 0
  %v487 = vsel %vm149, %v126, 0
  %v490 = vsel %vm149, %v127, 0
  %v493 = vsel %vm149, %v128, 0
  %v496 = vsel %vm149, %v129, 0
  %v499 = vsel %vm149, %v130, 0
  %v502 = vsel %vm149, %v131, 0
  %v505 = vsel %vm149, %v132, 0
  %v508 = vsel %vm149, %v133, 0
  %v511 = vsel %vm149, %v134, 0
  %v514 = vsel %vm149, %v135, 0
  %v517 = vsel %vm149, %v136, 0
  %v520 = vsel %vm149, %v137, 0
  %v523 = vsel %vm149, %v138, 0
  %v526 = vsel %vm149, %v139, 0
  %v529 = vsel %vm149, %v140, 0
  %v532 = vsel %vm149, %v141, 0
  %v535 = vsel %vm149, %v142, 0
  %v538 = vsel %vm149, %v143, 0
  %vm540 = vcmask 1043456
  %v542 = vsel %vm540, %v148, 0
  %544 = vmatpush.msra.mxu0 0.0
  %545 = vmatpush.msra.mxu0 0.0
  %546 = vmatpush.msra.mxu0 0.0
  %547 = vmatpush.msra.mxu0 0.0
  %548 = vmatpush.msra.mxu0 0.0
  %549 = vmatpush.msra.mxu0 0.0
  %550 = vmatpush.msra.mxu0 0.0
  %551 = vmatpush.msra.mxu0 0.0
  %552 = vmatpush.msra.mxu0 0.0
  %553 = vmatpush.msra.mxu0 0.0
  %554 = vmatpush.msra.mxu0 0.0
  %555 = vmatpush.msra.mxu0 %v542
  %556 = vmatpush.msra.mxu0 %v147
  %557 = vmatpush.msra.mxu0 %v146
  %558 = vmatpush.msra.mxu0 %v145
  %559 = vmatpush.msra.mxu0 %v144
  %560 = vmatmul.f32.gmra.mxu0 %v151
  %v561 = vpop.f32.mrf.mxu0
  %v562 = vadd.f32 0.0, %v561
  %563 = vmatmul.f32.gmra.mxu0 %v154
  %v564 = vpop.f32.mrf.mxu0
  %v565 = vadd.f32 0.0, %v564
  %566 = vmatmul.f32.gmra.mxu0 %v157
  %v567 = vpop.f32.mrf.mxu0
  %v568 = vadd.f32 0.0, %v567
  %569 = vmatmul.f32.gmra.mxu0 %v160
  %v570 = vpop.f32.mrf.mxu0
  %v571 = vadd.f32 0.0, %v570
  %572 = vmatmul.f32.gmra.mxu0 %v163
  %v573 = vpop.f32.mrf.mxu0
  %v574 = vadd.f32 0.0, %v573
  %575 = vmatmul.f32.gmra.mxu0 %v166
  %v576 = vpop.f32.mrf.mxu0
  %v577 = vadd.f32 0.0, %v576
  %578 = vmatmul.f32.gmra.mxu0 %v169
  %v579 = vpop.f32.mrf.mxu0
  %v580 = vadd.f32 0.0, %v579
  %581 = vmatmul.f32.gmra.mxu0 %v172
  %v582 = vpop.f32.mrf.mxu0
  %v583 = vadd.f32 0.0, %v582
  %584 = vmatmul.f32.gmra.mxu0 %v175
  %v585 = vpop.f32.mrf.mxu0
  %v586 = vadd.f32 0.0, %v585
  %587 = vmatmul.f32.gmra.mxu0 %v178
  %v588 = vpop.f32.mrf.mxu0
  %v589 = vadd.f32 0.0, %v588
  %590 = vmatmul.f32.gmra.mxu0 %v181
  %v591 = vpop.f32.mrf.mxu0
  %v592 = vadd.f32 0.0, %v591
  %593 = vmatmul.f32.gmra.mxu0 %v184
  %v594 = vpop.f32.mrf.mxu0
  %v595 = vadd.f32 0.0, %v594
  %596 = vmatmul.f32.gmra.mxu0 %v187
  %v597 = vpop.f32.mrf.mxu0
  %v598 = vadd.f32 0.0, %v597
  %599 = vmatmul.f32.gmra.mxu0 %v190
  %v600 = vpop.f32.mrf.mxu0
  %v601 = vadd.f32 0.0, %v600
  %602 = vmatmul.f32.gmra.mxu0 %v193
  %v603 = vpop.f32.mrf.mxu0
  %v604 = vadd.f32 0.0, %v603
  %605 = vmatmul.f32.gmra.mxu0 %v196
  %v606 = vpop.f32.mrf.mxu0
  %v607 = vadd.f32 0.0, %v606
  %608 = vmatmul.f32.gmra.mxu0 %v199
  %v609 = vpop.f32.mrf.mxu0
  %v610 = vadd.f32 0.0, %v609
  %611 = vmatmul.f32.gmra.mxu0 %v202
  %v612 = vpop.f32.mrf.mxu0
  %v613 = vadd.f32 0.0, %v612
  %614 = vmatmul.f32.gmra.mxu0 %v205
  %v615 = vpop.f32.mrf.mxu0
  %v616 = vadd.f32 0.0, %v615
  %617 = vmatmul.f32.gmra.mxu0 %v208
  %v618 = vpop.f32.mrf.mxu0
  %v619 = vadd.f32 0.0, %v618
  %620 = vmatmul.f32.gmra.mxu0 %v211
  %v621 = vpop.f32.mrf.mxu0
  %v622 = vadd.f32 0.0, %v621
  %623 = vmatmul.f32.gmra.mxu0 %v214
  %v624 = vpop.f32.mrf.mxu0
  %v625 = vadd.f32 0.0, %v624
  %626 = vmatmul.f32.gmra.mxu0 %v217
  %v627 = vpop.f32.mrf.mxu0
  %v628 = vadd.f32 0.0, %v627
  %629 = vmatmul.f32.gmra.mxu0 %v220
  %v630 = vpop.f32.mrf.mxu0
  %v631 = vadd.f32 0.0, %v630
  %632 = vmatmul.f32.gmra.mxu0 %v223
  %v633 = vpop.f32.mrf.mxu0
  %v634 = vadd.f32 0.0, %v633
  %635 = vmatmul.f32.gmra.mxu0 %v226
  %v636 = vpop.f32.mrf.mxu0
  %v637 = vadd.f32 0.0, %v636
  %638 = vmatmul.f32.gmra.mxu0 %v229
  %v639 = vpop.f32.mrf.mxu0
  %v640 = vadd.f32 0.0, %v639
  %641 = vmatmul.f32.gmra.mxu0 %v232
  %v642 = vpop.f32.mrf.mxu0
  %v643 = vadd.f32 0.0, %v642
  %644 = vmatmul.f32.gmra.mxu0 %v235
  %v645 = vpop.f32.mrf.mxu0
  %v646 = vadd.f32 0.0, %v645
  %647 = vmatmul.f32.gmra.mxu0 %v238
  %v648 = vpop.f32.mrf.mxu0
  %v649 = vadd.f32 0.0, %v648
  %650 = vmatmul.f32.gmra.mxu0 %v241
  %v651 = vpop.f32.mrf.mxu0
  %v652 = vadd.f32 0.0, %v651
  %653 = vmatmul.f32.gmra.mxu0 %v244
  %v654 = vpop.f32.mrf.mxu0
  %v655 = vadd.f32 0.0, %v654
  %656 = vmatmul.f32.gmra.mxu0 %v247
  %v657 = vpop.f32.mrf.mxu0
  %v658 = vadd.f32 0.0, %v657
  %659 = vmatmul.f32.gmra.mxu0 %v250
  %v660 = vpop.f32.mrf.mxu0
  %v661 = vadd.f32 0.0, %v660
  %662 = vmatmul.f32.gmra.mxu0 %v253
  %v663 = vpop.f32.mrf.mxu0
  %v664 = vadd.f32 0.0, %v663
  %665 = vmatmul.f32.gmra.mxu0 %v256
  %v666 = vpop.f32.mrf.mxu0
  %v667 = vadd.f32 0.0, %v666
  %668 = vmatmul.f32.gmra.mxu0 %v259
  %v669 = vpop.f32.mrf.mxu0
  %v670 = vadd.f32 0.0, %v669
  %671 = vmatmul.f32.gmra.mxu0 %v262
  %v672 = vpop.f32.mrf.mxu0
  %v673 = vadd.f32 0.0, %v672
  %674 = vmatmul.f32.gmra.mxu0 %v265
  %v675 = vpop.f32.mrf.mxu0
  %v676 = vadd.f32 0.0, %v675
  %677 = vmatmul.f32.gmra.mxu0 %v268
  %v678 = vpop.f32.mrf.mxu0
  %v679 = vadd.f32 0.0, %v678
  %680 = vmatmul.f32.gmra.mxu0 %v271
  %v681 = vpop.f32.mrf.mxu0
  %v682 = vadd.f32 0.0, %v681
  %683 = vmatmul.f32.gmra.mxu0 %v274
  %v684 = vpop.f32.mrf.mxu0
  %v685 = vadd.f32 0.0, %v684
  %686 = vmatmul.f32.gmra.mxu0 %v277
  %v687 = vpop.f32.mrf.mxu0
  %v688 = vadd.f32 0.0, %v687
  %689 = vmatmul.f32.gmra.mxu0 %v280
  %v690 = vpop.f32.mrf.mxu0
  %v691 = vadd.f32 0.0, %v690
  %692 = vmatmul.f32.gmra.mxu0 %v283
  %v693 = vpop.f32.mrf.mxu0
  %v694 = vadd.f32 0.0, %v693
  %695 = vmatmul.f32.gmra.mxu0 %v286
  %v696 = vpop.f32.mrf.mxu0
  %v697 = vadd.f32 0.0, %v696
  %698 = vmatmul.f32.gmra.mxu0 %v289
  %v699 = vpop.f32.mrf.mxu0
  %v700 = vadd.f32 0.0, %v699
  %701 = vmatmul.f32.gmra.mxu0 %v292
  %v702 = vpop.f32.mrf.mxu0
  %v703 = vadd.f32 0.0, %v702
  %704 = vmatmul.f32.gmra.mxu0 %v295
  %v705 = vpop.f32.mrf.mxu0
  %v706 = vadd.f32 0.0, %v705
  %707 = vmatmul.f32.gmra.mxu0 %v298
  %v708 = vpop.f32.mrf.mxu0
  %v709 = vadd.f32 0.0, %v708
  %710 = vmatmul.f32.gmra.mxu0 %v301
  %v711 = vpop.f32.mrf.mxu0
  %v712 = vadd.f32 0.0, %v711
  %713 = vmatmul.f32.gmra.mxu0 %v304
  %v714 = vpop.f32.mrf.mxu0
  %v715 = vadd.f32 0.0, %v714
  %716 = vmatmul.f32.gmra.mxu0 %v307
  %v717 = vpop.f32.mrf.mxu0
  %v718 = vadd.f32 0.0, %v717
  %719 = vmatmul.f32.gmra.mxu0 %v310
  %v720 = vpop.f32.mrf.mxu0
  %v721 = vadd.f32 0.0, %v720
  %722 = vmatmul.f32.gmra.mxu0 %v313
  %v723 = vpop.f32.mrf.mxu0
  %v724 = vadd.f32 0.0, %v723
  %725 = vmatmul.f32.gmra.mxu0 %v316
  %v726 = vpop.f32.mrf.mxu0
  %v727 = vadd.f32 0.0, %v726
  %728 = vmatmul.f32.gmra.mxu0 %v319
  %v729 = vpop.f32.mrf.mxu0
  %v730 = vadd.f32 0.0, %v729
  %731 = vmatmul.f32.gmra.mxu0 %v322
  %v732 = vpop.f32.mrf.mxu0
  %v733 = vadd.f32 0.0, %v732
  %734 = vmatmul.f32.gmra.mxu0 %v325
  %v735 = vpop.f32.mrf.mxu0
  %v736 = vadd.f32 0.0, %v735
  %737 = vmatmul.f32.gmra.mxu0 %v328
  %v738 = vpop.f32.mrf.mxu0
  %v739 = vadd.f32 0.0, %v738
  %740 = vmatmul.f32.gmra.mxu0 %v331
  %v741 = vpop.f32.mrf.mxu0
  %v742 = vadd.f32 0.0, %v741
  %743 = vmatmul.f32.gmra.mxu0 %v334
  %v744 = vpop.f32.mrf.mxu0
  %v745 = vadd.f32 0.0, %v744
  %746 = vmatmul.f32.gmra.mxu0 %v337
  %v747 = vpop.f32.mrf.mxu0
  %v748 = vadd.f32 0.0, %v747
  %749 = vmatmul.f32.gmra.mxu0 %v340
  %v750 = vpop.f32.mrf.mxu0
  %v751 = vadd.f32 0.0, %v750
  %752 = vmatmul.f32.gmra.mxu0 %v343
  %v753 = vpop.f32.mrf.mxu0
  %v754 = vadd.f32 0.0, %v753
  %755 = vmatmul.f32.gmra.mxu0 %v346
  %v756 = vpop.f32.mrf.mxu0
  %v757 = vadd.f32 0.0, %v756
  %758 = vmatmul.f32.gmra.mxu0 %v349
  %v759 = vpop.f32.mrf.mxu0
  %v760 = vadd.f32 0.0, %v759
  %761 = vmatmul.f32.gmra.mxu0 %v352
  %v762 = vpop.f32.mrf.mxu0
  %v763 = vadd.f32 0.0, %v762
  %764 = vmatmul.f32.gmra.mxu0 %v355
  %v765 = vpop.f32.mrf.mxu0
  %v766 = vadd.f32 0.0, %v765
  %767 = vmatmul.f32.gmra.mxu0 %v358
  %v768 = vpop.f32.mrf.mxu0
  %v769 = vadd.f32 0.0, %v768
  %770 = vmatmul.f32.gmra.mxu0 %v361
  %v771 = vpop.f32.mrf.mxu0
  %v772 = vadd.f32 0.0, %v771
  %773 = vmatmul.f32.gmra.mxu0 %v364
  %v774 = vpop.f32.mrf.mxu0
  %v775 = vadd.f32 0.0, %v774
  %776 = vmatmul.f32.gmra.mxu0 %v367
  %v777 = vpop.f32.mrf.mxu0
  %v778 = vadd.f32 0.0, %v777
  %779 = vmatmul.f32.gmra.mxu0 %v370
  %v780 = vpop.f32.mrf.mxu0
  %v781 = vadd.f32 0.0, %v780
  %782 = vmatmul.f32.gmra.mxu0 %v373
  %v783 = vpop.f32.mrf.mxu0
  %v784 = vadd.f32 0.0, %v783
  %785 = vmatmul.f32.gmra.mxu0 %v376
  %v786 = vpop.f32.mrf.mxu0
  %v787 = vadd.f32 0.0, %v786
  %788 = vmatmul.f32.gmra.mxu0 %v379
  %v789 = vpop.f32.mrf.mxu0
  %v790 = vadd.f32 0.0, %v789
  %791 = vmatmul.f32.gmra.mxu0 %v382
  %v792 = vpop.f32.mrf.mxu0
  %v793 = vadd.f32 0.0, %v792
  %794 = vmatmul.f32.gmra.mxu0 %v385
  %v795 = vpop.f32.mrf.mxu0
  %v796 = vadd.f32 0.0, %v795
  %797 = vmatmul.f32.gmra.mxu0 %v388
  %v798 = vpop.f32.mrf.mxu0
  %v799 = vadd.f32 0.0, %v798
  %800 = vmatmul.f32.gmra.mxu0 %v391
  %v801 = vpop.f32.mrf.mxu0
  %v802 = vadd.f32 0.0, %v801
  %803 = vmatmul.f32.gmra.mxu0 %v394
  %v804 = vpop.f32.mrf.mxu0
  %v805 = vadd.f32 0.0, %v804
  %806 = vmatmul.f32.gmra.mxu0 %v397
  %v807 = vpop.f32.mrf.mxu0
  %v808 = vadd.f32 0.0, %v807
  %809 = vmatmul.f32.gmra.mxu0 %v400
  %v810 = vpop.f32.mrf.mxu0
  %v811 = vadd.f32 0.0, %v810
  %812 = vmatmul.f32.gmra.mxu0 %v403
  %v813 = vpop.f32.mrf.mxu0
  %v814 = vadd.f32 0.0, %v813
  %815 = vmatmul.f32.gmra.mxu0 %v406
  %v816 = vpop.f32.mrf.mxu0
  %v817 = vadd.f32 0.0, %v816
  %818 = vmatmul.f32.gmra.mxu0 %v409
  %v819 = vpop.f32.mrf.mxu0
  %v820 = vadd.f32 0.0, %v819
  %821 = vmatmul.f32.gmra.mxu0 %v412
  %v822 = vpop.f32.mrf.mxu0
  %v823 = vadd.f32 0.0, %v822
  %824 = vmatmul.f32.gmra.mxu0 %v415
  %v825 = vpop.f32.mrf.mxu0
  %v826 = vadd.f32 0.0, %v825
  %827 = vmatmul.f32.gmra.mxu0 %v418
  %v828 = vpop.f32.mrf.mxu0
  %v829 = vadd.f32 0.0, %v828
  %830 = vmatmul.f32.gmra.mxu0 %v421
  %v831 = vpop.f32.mrf.mxu0
  %v832 = vadd.f32 0.0, %v831
  %833 = vmatmul.f32.gmra.mxu0 %v424
  %v834 = vpop.f32.mrf.mxu0
  %v835 = vadd.f32 0.0, %v834
  %836 = vmatmul.f32.gmra.mxu0 %v427
  %v837 = vpop.f32.mrf.mxu0
  %v838 = vadd.f32 0.0, %v837
  %839 = vmatmul.f32.gmra.mxu0 %v430
  %v840 = vpop.f32.mrf.mxu0
  %v841 = vadd.f32 0.0, %v840
  %842 = vmatmul.f32.gmra.mxu0 %v433
  %v843 = vpop.f32.mrf.mxu0
  %v844 = vadd.f32 0.0, %v843
  %845 = vmatmul.f32.gmra.mxu0 %v436
  %v846 = vpop.f32.mrf.mxu0
  %v847 = vadd.f32 0.0, %v846
  %848 = vmatmul.f32.gmra.mxu0 %v439
  %v849 = vpop.f32.mrf.mxu0
  %v850 = vadd.f32 0.0, %v849
  %851 = vmatmul.f32.gmra.mxu0 %v442
  %v852 = vpop.f32.mrf.mxu0
  %v853 = vadd.f32 0.0, %v852
  %854 = vmatmul.f32.gmra.mxu0 %v445
  %v855 = vpop.f32.mrf.mxu0
  %v856 = vadd.f32 0.0, %v855
  %857 = vmatmul.f32.gmra.mxu0 %v448
  %v858 = vpop.f32.mrf.mxu0
  %v859 = vadd.f32 0.0, %v858
  %860 = vmatmul.f32.gmra.mxu0 %v451
  %v861 = vpop.f32.mrf.mxu0
  %v862 = vadd.f32 0.0, %v861
  %863 = vmatmul.f32.gmra.mxu0 %v454
  %v864 = vpop.f32.mrf.mxu0
  %v865 = vadd.f32 0.0, %v864
  %866 = vmatmul.f32.gmra.mxu0 %v457
  %v867 = vpop.f32.mrf.mxu0
  %v868 = vadd.f32 0.0, %v867
  %869 = vmatmul.f32.gmra.mxu0 %v460
  %v870 = vpop.f32.mrf.mxu0
  %v871 = vadd.f32 0.0, %v870
  %872 = vmatmul.f32.gmra.mxu0 %v463
  %v873 = vpop.f32.mrf.mxu0
  %v874 = vadd.f32 0.0, %v873
  %875 = vmatmul.f32.gmra.mxu0 %v466
  %v876 = vpop.f32.mrf.mxu0
  %v877 = vadd.f32 0.0, %v876
  %878 = vmatmul.f32.gmra.mxu0 %v469
  %v879 = vpop.f32.mrf.mxu0
  %v880 = vadd.f32 0.0, %v879
  %881 = vmatmul.f32.gmra.mxu0 %v472
  %v882 = vpop.f32.mrf.mxu0
  %v883 = vadd.f32 0.0, %v882
  %884 = vmatmul.f32.gmra.mxu0 %v475
  %v885 = vpop.f32.mrf.mxu0
  %v886 = vadd.f32 0.0, %v885
  %887 = vmatmul.f32.gmra.mxu0 %v478
  %v888 = vpop.f32.mrf.mxu0
  %v889 = vadd.f32 0.0, %v888
  %890 = vmatmul.f32.gmra.mxu0 %v481
  %v891 = vpop.f32.mrf.mxu0
  %v892 = vadd.f32 0.0, %v891
  %893 = vmatmul.f32.gmra.mxu0 %v484
  %v894 = vpop.f32.mrf.mxu0
  %v895 = vadd.f32 0.0, %v894
  %896 = vmatmul.f32.gmra.mxu0 %v487
  %v897 = vpop.f32.mrf.mxu0
  %v898 = vadd.f32 0.0, %v897
  %899 = vmatmul.f32.gmra.mxu0 %v490
  %v900 = vpop.f32.mrf.mxu0
  %v901 = vadd.f32 0.0, %v900
  %902 = vmatmul.f32.gmra.mxu0 %v493
  %v903 = vpop.f32.mrf.mxu0
  %v904 = vadd.f32 0.0, %v903
  %905 = vmatmul.f32.gmra.mxu0 %v496
  %v906 = vpop.f32.mrf.mxu0
  %v907 = vadd.f32 0.0, %v906
  %908 = vmatmul.f32.gmra.mxu0 %v499
  %v909 = vpop.f32.mrf.mxu0
  %v910 = vadd.f32 0.0, %v909
  %911 = vmatmul.f32.gmra.mxu0 %v502
  %v912 = vpop.f32.mrf.mxu0
  %v913 = vadd.f32 0.0, %v912
  %914 = vmatmul.f32.gmra.mxu0 %v505
  %v915 = vpop.f32.mrf.mxu0
  %v916 = vadd.f32 0.0, %v915
  %917 = vmatmul.f32.gmra.mxu0 %v508
  %v918 = vpop.f32.mrf.mxu0
  %v919 = vadd.f32 0.0, %v918
  %920 = vmatmul.f32.gmra.mxu0 %v511
  %v921 = vpop.f32.mrf.mxu0
  %v922 = vadd.f32 0.0, %v921
  %923 = vmatmul.f32.gmra.mxu0 %v514
  %v924 = vpop.f32.mrf.mxu0
  %v925 = vadd.f32 0.0, %v924
  %926 = vmatmul.f32.gmra.mxu0 %v517
  %v927 = vpop.f32.mrf.mxu0
  %v928 = vadd.f32 0.0, %v927
  %929 = vmatmul.f32.gmra.mxu0 %v520
  %v930 = vpop.f32.mrf.mxu0
  %v931 = vadd.f32 0.0, %v930
  %932 = vmatmul.f32.gmra.mxu0 %v523
  %v933 = vpop.f32.mrf.mxu0
  %v934 = vadd.f32 0.0, %v933
  %935 = vmatmul.f32.gmra.mxu0 %v526
  %v936 = vpop.f32.mrf.mxu0
  %v937 = vadd.f32 0.0, %v936
  %938 = vmatmul.f32.gmra.mxu0 %v529
  %v939 = vpop.f32.mrf.mxu0
  %v940 = vadd.f32 0.0, %v939
  %941 = vmatmul.f32.gmra.mxu0 %v532
  %v942 = vpop.f32.mrf.mxu0
  %v943 = vadd.f32 0.0, %v942
  %944 = vmatmul.f32.gmra.mxu0 %v535
  %v945 = vpop.f32.mrf.mxu0
  %v946 = vadd.f32 0.0, %v945
  %947 = vmatmul.f32.gmra.mxu0 %v538
  %v948 = vpop.f32.mrf.mxu0
  %v949 = vadd.f32 0.0, %v948
  %950 = vdwg.mxu0
  %vm951 = vcmask 64512
  %v952 = vsel %vm951, %v562, 0.0
  %v953 = vsel %vm951, %v565, 0.0
  %v954 = vadd.f32 %v952, %v953
  %v955 = vsel %vm951, %v568, 0.0
  %v956 = vadd.f32 %v954, %v955
  %v957 = vsel %vm951, %v571, 0.0
  %v958 = vadd.f32 %v956, %v957
  %v959 = vsel %vm951, %v574, 0.0
  %v960 = vadd.f32 %v958, %v959
  %v961 = vsel %vm951, %v577, 0.0
  %v962 = vadd.f32 %v960, %v961
  %v963 = vsel %vm951, %v580, 0.0
  %v964 = vadd.f32 %v962, %v963
  %v965 = vsel %vm951, %v583, 0.0
  %v966 = vadd.f32 %v964, %v965
  %v967 = vsel %vm951, %v586, 0.0
  %v968 = vadd.f32 %v966, %v967
  %v969 = vsel %vm951, %v589, 0.0
  %v970 = vadd.f32 %v968, %v969
  %v971 = vsel %vm951, %v592, 0.0
  %v972 = vadd.f32 %v970, %v971
  %v973 = vsel %vm951, %v595, 0.0
  %v974 = vadd.f32 %v972, %v973
  %v975 = vsel %vm951, %v598, 0.0
  %v976 = vadd.f32 %v974, %v975
  %v977 = vsel %vm951, %v601, 0.0
  %v978 = vadd.f32 %v976, %v977
  %v979 = vsel %vm951, %v604, 0.0
  %v980 = vadd.f32 %v978, %v979
  %v981 = vsel %vm951, %v607, 0.0
  %v982 = vadd.f32 %v980, %v981
  %v983 = vsel %vm951, %v610, 0.0
  %v984 = vadd.f32 %v982, %v983
  %v985 = vsel %vm951, %v613, 0.0
  %v986 = vadd.f32 %v984, %v985
  %v987 = vsel %vm951, %v616, 0.0
  %v988 = vadd.f32 %v986, %v987
  %v989 = vsel %vm951, %v619, 0.0
  %v990 = vadd.f32 %v988, %v989
  %v991 = vsel %vm951, %v622, 0.0
  %v992 = vadd.f32 %v990, %v991
  %v993 = vsel %vm951, %v625, 0.0
  %v994 = vadd.f32 %v992, %v993
  %v995 = vsel %vm951, %v628, 0.0
  %v996 = vadd.f32 %v994, %v995
  %v997 = vsel %vm951, %v631, 0.0
  %v998 = vadd.f32 %v996, %v997
  %v999 = vsel %vm951, %v634, 0.0
  %v1000 = vadd.f32 %v998, %v999
  %v1001 = vsel %vm951, %v637, 0.0
  %v1002 = vadd.f32 %v1000, %v1001
  %v1003 = vsel %vm951, %v640, 0.0
  %v1004 = vadd.f32 %v1002, %v1003
  %v1005 = vsel %vm951, %v643, 0.0
  %v1006 = vadd.f32 %v1004, %v1005
  %v1007 = vsel %vm951, %v646, 0.0
  %v1008 = vadd.f32 %v1006, %v1007
  %v1009 = vsel %vm951, %v649, 0.0
  %v1010 = vadd.f32 %v1008, %v1009
  %v1011 = vsel %vm951, %v652, 0.0
  %v1012 = vadd.f32 %v1010, %v1011
  %v1013 = vsel %vm951, %v655, 0.0
  %v1014 = vadd.f32 %v1012, %v1013
  %v1015 = vsel %vm951, %v658, 0.0
  %v1016 = vadd.f32 %v1014, %v1015
  %v1017 = vsel %vm951, %v661, 0.0
  %v1018 = vadd.f32 %v1016, %v1017
  %v1019 = vsel %vm951, %v664, 0.0
  %v1020 = vadd.f32 %v1018, %v1019
  %v1021 = vsel %vm951, %v667, 0.0
  %v1022 = vadd.f32 %v1020, %v1021
  %v1023 = vsel %vm951, %v670, 0.0
  %v1024 = vadd.f32 %v1022, %v1023
  %v1025 = vsel %vm951, %v673, 0.0
  %v1026 = vadd.f32 %v1024, %v1025
  %v1027 = vsel %vm951, %v676, 0.0
  %v1028 = vadd.f32 %v1026, %v1027
  %v1029 = vsel %vm951, %v679, 0.0
  %v1030 = vadd.f32 %v1028, %v1029
  %v1031 = vsel %vm951, %v682, 0.0
  %v1032 = vadd.f32 %v1030, %v1031
  %v1033 = vsel %vm951, %v685, 0.0
  %v1034 = vadd.f32 %v1032, %v1033
  %v1035 = vsel %vm951, %v688, 0.0
  %v1036 = vadd.f32 %v1034, %v1035
  %v1037 = vsel %vm951, %v691, 0.0
  %v1038 = vadd.f32 %v1036, %v1037
  %v1039 = vsel %vm951, %v694, 0.0
  %v1040 = vadd.f32 %v1038, %v1039
  %v1041 = vsel %vm951, %v697, 0.0
  %v1042 = vadd.f32 %v1040, %v1041
  %v1043 = vsel %vm951, %v700, 0.0
  %v1044 = vadd.f32 %v1042, %v1043
  %v1045 = vsel %vm951, %v703, 0.0
  %v1046 = vadd.f32 %v1044, %v1045
  %v1047 = vsel %vm951, %v706, 0.0
  %v1048 = vadd.f32 %v1046, %v1047
  %v1049 = vrot.slane %v1048, 4
  %v1050 = vadd.f32 %v1048, %v1049
  %v1051 = vrot.slane %v1050, 2
  %v1052 = vadd.f32 %v1050, %v1051
  %v1053 = vrot.slane %v1052, 1
  %v1054 = vadd.f32 %v1052, %v1053
  %v1055 = vmul.f32 %v1054, 0.0025510204
  %v1056 = vmul.f32 %v562, %v562
  %v1057 = vmul.f32 %v565, %v565
  %v1058 = vmul.f32 %v568, %v568
  %v1059 = vmul.f32 %v571, %v571
  %v1060 = vmul.f32 %v574, %v574
  %v1061 = vmul.f32 %v577, %v577
  %v1062 = vmul.f32 %v580, %v580
  %v1063 = vmul.f32 %v583, %v583
  %v1064 = vmul.f32 %v586, %v586
  %v1065 = vmul.f32 %v589, %v589
  %v1066 = vmul.f32 %v592, %v592
  %v1067 = vmul.f32 %v595, %v595
  %v1068 = vmul.f32 %v598, %v598
  %v1069 = vmul.f32 %v601, %v601
  %v1070 = vmul.f32 %v604, %v604
  %v1071 = vmul.f32 %v607, %v607
  %v1072 = vmul.f32 %v610, %v610
  %v1073 = vmul.f32 %v613, %v613
  %v1074 = vmul.f32 %v616, %v616
  %v1075 = vmul.f32 %v619, %v619
  %v1076 = vmul.f32 %v622, %v622
  %v1077 = vmul.f32 %v625, %v625
  %v1078 = vmul.f32 %v628, %v628
  %v1079 = vmul.f32 %v631, %v631
  %v1080 = vmul.f32 %v634, %v634
  %v1081 = vmul.f32 %v637, %v637
  %v1082 = vmul.f32 %v640, %v640
  %v1083 = vmul.f32 %v643, %v643
  %v1084 = vmul.f32 %v646, %v646
  %v1085 = vmul.f32 %v649, %v649
  %v1086 = vmul.f32 %v652, %v652
  %v1087 = vmul.f32 %v655, %v655
  %v1088 = vmul.f32 %v658, %v658
  %v1089 = vmul.f32 %v661, %v661
  %v1090 = vmul.f32 %v664, %v664
  %v1091 = vmul.f32 %v667, %v667
  %v1092 = vmul.f32 %v670, %v670
  %v1093 = vmul.f32 %v673, %v673
  %v1094 = vmul.f32 %v676, %v676
  %v1095 = vmul.f32 %v679, %v679
  %v1096 = vmul.f32 %v682, %v682
  %v1097 = vmul.f32 %v685, %v685
  %v1098 = vmul.f32 %v688, %v688
  %v1099 = vmul.f32 %v691, %v691
  %v1100 = vmul.f32 %v694, %v694
  %v1101 = vmul.f32 %v697, %v697
  %v1102 = vmul.f32 %v700, %v700
  %v1103 = vmul.f32 %v703, %v703
  %v1104 = vmul.f32 %v706, %v706
  %v1105 = vsel %vm951, %v1056, 0.0
  %v1106 = vsel %vm951, %v1057, 0.0
  %v1107 = vadd.f32 %v1105, %v1106
  %v1108 = vsel %vm951, %v1058, 0.0
  %v1109 = vadd.f32 %v1107, %v1108
  %v1110 = vsel %vm951, %v1059, 0.0
  %v1111 = vadd.f32 %v1109, %v1110
  %v1112 = vsel %vm951, %v1060, 0.0
  %v1113 = vadd.f32 %v1111, %v1112
  %v1114 = vsel %vm951, %v1061, 0.0
  %v1115 = vadd.f32 %v1113, %v1114
  %v1116 = vsel %vm951, %v1062, 0.0
  %v1117 = vadd.f32 %v1115, %v1116
  %v1118 = vsel %vm951, %v1063, 0.0
  %v1119 = vadd.f32 %v1117, %v1118
  %v1120 = vsel %vm951, %v1064, 0.0
  %v1121 = vadd.f32 %v1119, %v1120
  %v1122 = vsel %vm951, %v1065, 0.0
  %v1123 = vadd.f32 %v1121, %v1122
  %v1124 = vsel %vm951, %v1066, 0.0
  %v1125 = vadd.f32 %v1123, %v1124
  %v1126 = vsel %vm951, %v1067, 0.0
  %v1127 = vadd.f32 %v1125, %v1126
  %v1128 = vsel %vm951, %v1068, 0.0
  %v1129 = vadd.f32 %v1127, %v1128
  %v1130 = vsel %vm951, %v1069, 0.0
  %v1131 = vadd.f32 %v1129, %v1130
  %v1132 = vsel %vm951, %v1070, 0.0
  %v1133 = vadd.f32 %v1131, %v1132
  %v1134 = vsel %vm951, %v1071, 0.0
  %v1135 = vadd.f32 %v1133, %v1134
  %v1136 = vsel %vm951, %v1072, 0.0
  %v1137 = vadd.f32 %v1135, %v1136
  %v1138 = vsel %vm951, %v1073, 0.0
  %v1139 = vadd.f32 %v1137, %v1138
  %v1140 = vsel %vm951, %v1074, 0.0
  %v1141 = vadd.f32 %v1139, %v1140
  %v1142 = vsel %vm951, %v1075, 0.0
  %v1143 = vadd.f32 %v1141, %v1142
  %v1144 = vsel %vm951, %v1076, 0.0
  %v1145 = vadd.f32 %v1143, %v1144
  %v1146 = vsel %vm951, %v1077, 0.0
  %v1147 = vadd.f32 %v1145, %v1146
  %v1148 = vsel %vm951, %v1078, 0.0
  %v1149 = vadd.f32 %v1147, %v1148
  %v1150 = vsel %vm951, %v1079, 0.0
  %v1151 = vadd.f32 %v1149, %v1150
  %v1152 = vsel %vm951, %v1080, 0.0
  %v1153 = vadd.f32 %v1151, %v1152
  %v1154 = vsel %vm951, %v1081, 0.0
  %v1155 = vadd.f32 %v1153, %v1154
  %v1156 = vsel %vm951, %v1082, 0.0
  %v1157 = vadd.f32 %v1155, %v1156
  %v1158 = vsel %vm951, %v1083, 0.0
  %v1159 = vadd.f32 %v1157, %v1158
  %v1160 = vsel %vm951, %v1084, 0.0
  %v1161 = vadd.f32 %v1159, %v1160
  %v1162 = vsel %vm951, %v1085, 0.0
  %v1163 = vadd.f32 %v1161, %v1162
  %v1164 = vsel %vm951, %v1086, 0.0
  %v1165 = vadd.f32 %v1163, %v1164
  %v1166 = vsel %vm951, %v1087, 0.0
  %v1167 = vadd.f32 %v1165, %v1166
  %v1168 = vsel %vm951, %v1088, 0.0
  %v1169 = vadd.f32 %v1167, %v1168
  %v1170 = vsel %vm951, %v1089, 0.0
  %v1171 = vadd.f32 %v1169, %v1170
  %v1172 = vsel %vm951, %v1090, 0.0
  %v1173 = vadd.f32 %v1171, %v1172
  %v1174 = vsel %vm951, %v1091, 0.0
  %v1175 = vadd.f32 %v1173, %v1174
  %v1176 = vsel %vm951, %v1092, 0.0
  %v1177 = vadd.f32 %v1175, %v1176
  %v1178 = vsel %vm951, %v1093, 0.0
  %v1179 = vadd.f32 %v1177, %v1178
  %v1180 = vsel %vm951, %v1094, 0.0
  %v1181 = vadd.f32 %v1179, %v1180
  %v1182 = vsel %vm951, %v1095, 0.0
  %v1183 = vadd.f32 %v1181, %v1182
  %v1184 = vsel %vm951, %v1096, 0.0
  %v1185 = vadd.f32 %v1183, %v1184
  %v1186 = vsel %vm951, %v1097, 0.0
  %v1187 = vadd.f32 %v1185, %v1186
  %v1188 = vsel %vm951, %v1098, 0.0
  %v1189 = vadd.f32 %v1187, %v1188
  %v1190 = vsel %vm951, %v1099, 0.0
  %v1191 = vadd.f32 %v1189, %v1190
  %v1192 = vsel %vm951, %v1100, 0.0
  %v1193 = vadd.f32 %v1191, %v1192
  %v1194 = vsel %vm951, %v1101, 0.0
  %v1195 = vadd.f32 %v1193, %v1194
  %v1196 = vsel %vm951, %v1102, 0.0
  %v1197 = vadd.f32 %v1195, %v1196
  %v1198 = vsel %vm951, %v1103, 0.0
  %v1199 = vadd.f32 %v1197, %v1198
  %v1200 = vsel %vm951, %v1104, 0.0
  %v1201 = vadd.f32 %v1199, %v1200
  %v1202 = vrot.slane %v1201, 4
  %v1203 = vadd.f32 %v1201, %v1202
  %v1204 = vrot.slane %v1203, 2
  %v1205 = vadd.f32 %v1203, %v1204
  %v1206 = vrot.slane %v1205, 1
  %v1207 = vadd.f32 %v1205, %v1206
  %v1208 = vmul.f32 %v1207, 0.0025510204
  %v1209 = vmul.f32 %v1055, %v1055
  %v1210 = vsub.f32 %v1208, %v1209
  %v1211 = vmax.f32 %v1210, 0.0
  %v1212 = vld [vmem:[%s2] sm:$0x1]
  %v1213 = vadd.f32 %v1211, 1e-05
  %v1214 = vrsqrt.pop %v1213
  %v1215 = vmul.f32 %v1214, %v1213
  %v1216 = vmul.f32 %v1215, %v1214
  %v1217 = vmul.f32 0.5, %v1216
  %v1218 = vsub.f32 1.5, %v1217
  %v1219 = vmul.f32 %v1214, %v1218
  %vm1220 = vweird.f32 %v1213
  %vm1221 = vweird.f32 %v1214
  %vm1222 = vmor %vm1220, %vm1221
  %v1223 = vsel %vm1222, %v1214, %v1219
  %v1224 = vmul.f32 %v1212, %v1223
  %v1225 = vld [vmem:[%s2 + $0x1] sm:$0x1]
  %v1226 = vmul.f32 %v1055, %v1224
  %v1227 = vsub.f32 %v1225, %v1226
  %v1228 = vperm.slane %v1224, 0
  %v1229 = vmul.f32 %v709, %v1228
  %v1230 = vmul.f32 %v712, %v1228
  %v1231 = vmul.f32 %v715, %v1228
  %v1232 = vmul.f32 %v718, %v1228
  %v1233 = vmul.f32 %v721, %v1228
  %v1234 = vmul.f32 %v724, %v1228
  %v1235 = vmul.f32 %v727, %v1228
  %v1236 = vmul.f32 %v730, %v1228
  %v1237 = vmul.f32 %v733, %v1228
  %v1238 = vmul.f32 %v736, %v1228
  %v1239 = vmul.f32 %v739, %v1228
  %v1240 = vmul.f32 %v742, %v1228
  %v1241 = vmul.f32 %v745, %v1228
  %v1242 = vmul.f32 %v748, %v1228
  %v1243 = vmul.f32 %v751, %v1228
  %v1244 = vmul.f32 %v754, %v1228
  %v1245 = vmul.f32 %v757, %v1228
  %v1246 = vmul.f32 %v760, %v1228
  %v1247 = vmul.f32 %v763, %v1228
  %v1248 = vmul.f32 %v766, %v1228
  %v1249 = vmul.f32 %v769, %v1228
  %v1250 = vmul.f32 %v772, %v1228
  %v1251 = vmul.f32 %v775, %v1228
  %v1252 = vmul.f32 %v778, %v1228
  %v1253 = vmul.f32 %v781, %v1228
  %v1254 = vmul.f32 %v784, %v1228
  %v1255 = vmul.f32 %v787, %v1228
  %v1256 = vmul.f32 %v790, %v1228
  %v1257 = vmul.f32 %v793, %v1228
  %v1258 = vmul.f32 %v796, %v1228
  %v1259 = vmul.f32 %v799, %v1228
  %v1260 = vmul.f32 %v802, %v1228
  %v1261 = vmul.f32 %v805, %v1228
  %v1262 = vmul.f32 %v808, %v1228
  %v1263 = vmul.f32 %v811, %v1228
  %v1264 = vmul.f32 %v814, %v1228
  %v1265 = vmul.f32 %v817, %v1228
  %v1266 = vmul.f32 %v820, %v1228
  %v1267 = vmul.f32 %v823, %v1228
  %v1268 = vmul.f32 %v826, %v1228
  %v1269 = vmul.f32 %v829, %v1228
  %v1270 = vmul.f32 %v832, %v1228
  %v1271 = vmul.f32 %v835, %v1228
  %v1272 = vmul.f32 %v838, %v1228
  %v1273 = vmul.f32 %v841, %v1228
  %v1274 = vmul.f32 %v844, %v1228
  %v1275 = vmul.f32 %v847, %v1228
  %v1276 = vmul.f32 %v850, %v1228
  %v1277 = vmul.f32 %v853, %v1228
  %v1278 = vmul.f32 %v856, %v1228
  %v1279 = vmul.f32 %v859, %v1228
  %v1280 = vmul.f32 %v862, %v1228
  %v1281 = vmul.f32 %v865, %v1228
  %v1282 = vmul.f32 %v868, %v1228
  %v1283 = vmul.f32 %v871, %v1228
  %v1284 = vmul.f32 %v874, %v1228
  %v1285 = vmul.f32 %v877, %v1228
  %v1286 = vmul.f32 %v880, %v1228
  %v1287 = vmul.f32 %v883, %v1228
  %v1288 = vmul.f32 %v886, %v1228
  %v1289 = vmul.f32 %v889, %v1228
  %v1290 = vmul.f32 %v892, %v1228
  %v1291 = vmul.f32 %v895, %v1228
  %v1292 = vmul.f32 %v898, %v1228
  %v1293 = vmul.f32 %v901, %v1228
  %v1294 = vmul.f32 %v904, %v1228
  %v1295 = vmul.f32 %v907, %v1228
  %v1296 = vmul.f32 %v910, %v1228
  %v1297 = vmul.f32 %v913, %v1228
  %v1298 = vmul.f32 %v916, %v1228
  %v1299 = vmul.f32 %v919, %v1228
  %v1300 = vmul.f32 %v922, %v1228
  %v1301 = vmul.f32 %v925, %v1228
  %v1302 = vmul.f32 %v928, %v1228
  %v1303 = vmul.f32 %v931, %v1228
  %v1304 = vmul.f32 %v934, %v1228
  %v1305 = vmul.f32 %v937, %v1228
  %v1306 = vmul.f32 %v940, %v1228
  %v1307 = vmul.f32 %v943, %v1228
  %v1308 = vmul.f32 %v946, %v1228
  %v1309 = vmul.f32 %v949, %v1228
  %v1310 = vperm.slane %v1227, 0
  %v1311 = vadd.f32 %v1229, %v1310
  %v1312 = vadd.f32 %v1230, %v1310
  %v1313 = vadd.f32 %v1231, %v1310
  %v1314 = vadd.f32 %v1232, %v1310
  %v1315 = vadd.f32 %v1233, %v1310
  %v1316 = vadd.f32 %v1234, %v1310
  %v1317 = vadd.f32 %v1235, %v1310
  %v1318 = vadd.f32 %v1236, %v1310
  %v1319 = vadd.f32 %v1237, %v1310
  %v1320 = vadd.f32 %v1238, %v1310
  %v1321 = vadd.f32 %v1239, %v1310
  %v1322 = vadd.f32 %v1240, %v1310
  %v1323 = vadd.f32 %v1241, %v1310
  %v1324 = vadd.f32 %v1242, %v1310
  %v1325 = vadd.f32 %v1243, %v1310
  %v1326 = vadd.f32 %v1244, %v1310
  %v1327 = vadd.f32 %v1245, %v1310
  %v1328 = vadd.f32 %v1246, %v1310
  %v1329 = vadd.f32 %v1247, %v1310
  %v1330 = vadd.f32 %v1248, %v1310
  %v1331 = vadd.f32 %v1249, %v1310
  %v1332 = vadd.f32 %v1250, %v1310
  %v1333 = vadd.f32 %v1251, %v1310
  %v1334 = vadd.f32 %v1252, %v1310
  %v1335 = vadd.f32 %v1253, %v1310
  %v1336 = vadd.f32 %v1254, %v1310
  %v1337 = vadd.f32 %v1255, %v1310
  %v1338 = vadd.f32 %v1256, %v1310
  %v1339 = vadd.f32 %v1257, %v1310
  %v1340 = vadd.f32 %v1258, %v1310
  %v1341 = vadd.f32 %v1259, %v1310
  %v1342 = vadd.f32 %v1260, %v1310
  %v1343 = vadd.f32 %v1261, %v1310
  %v1344 = vadd.f32 %v1262, %v1310
  %v1345 = vadd.f32 %v1263, %v1310
  %v1346 = vadd.f32 %v1264, %v1310
  %v1347 = vadd.f32 %v1265, %v1310
  %v1348 = vadd.f32 %v1266, %v1310
  %v1349 = vadd.f32 %v1267, %v1310
  %v1350 = vadd.f32 %v1268, %v1310
  %v1351 = vadd.f32 %v1269, %v1310
  %v1352 = vadd.f32 %v1270, %v1310
  %v1353 = vadd.f32 %v1271, %v1310
  %v1354 = vadd.f32 %v1272, %v1310
  %v1355 = vadd.f32 %v1273, %v1310
  %v1356 = vadd.f32 %v1274, %v1310
  %v1357 = vadd.f32 %v1275, %v1310
  %v1358 = vadd.f32 %v1276, %v1310
  %v1359 = vadd.f32 %v1277, %v1310
  %v1360 = vadd.f32 %v1278, %v1310
  %v1361 = vadd.f32 %v1279, %v1310
  %v1362 = vadd.f32 %v1280, %v1310
  %v1363 = vadd.f32 %v1281, %v1310
  %v1364 = vadd.f32 %v1282, %v1310
  %v1365 = vadd.f32 %v1283, %v1310
  %v1366 = vadd.f32 %v1284, %v1310
  %v1367 = vadd.f32 %v1285, %v1310
  %v1368 = vadd.f32 %v1286, %v1310
  %v1369 = vadd.f32 %v1287, %v1310
  %v1370 = vadd.f32 %v1288, %v1310
  %v1371 = vadd.f32 %v1289, %v1310
  %v1372 = vadd.f32 %v1290, %v1310
  %v1373 = vadd.f32 %v1291, %v1310
  %v1374 = vadd.f32 %v1292, %v1310
  %v1375 = vadd.f32 %v1293, %v1310
  %v1376 = vadd.f32 %v1294, %v1310
  %v1377 = vadd.f32 %v1295, %v1310
  %v1378 = vadd.f32 %v1296, %v1310
  %v1379 = vadd.f32 %v1297, %v1310
  %v1380 = vadd.f32 %v1298, %v1310
  %v1381 = vadd.f32 %v1299, %v1310
  %v1382 = vadd.f32 %v1300, %v1310
  %v1383 = vadd.f32 %v1301, %v1310
  %v1384 = vadd.f32 %v1302, %v1310
  %v1385 = vadd.f32 %v1303, %v1310
  %v1386 = vadd.f32 %v1304, %v1310
  %v1387 = vadd.f32 %v1305, %v1310
  %v1388 = vadd.f32 %v1306, %v1310
  %v1389 = vadd.f32 %v1307, %v1310
  %v1390 = vadd.f32 %v1308, %v1310
  %v1391 = vadd.f32 %v1309, %v1310
  %v1392 = vmax.f32 %v1311, %v1320
  %v1393 = vmax.f32 %v1312, %v1321
  %v1394 = vmax.f32 %v1313, %v1322
  %v1395 = vmax.f32 %v1314, %v1323
  %v1396 = vmax.f32 %v1315, %v1324
  %v1397 = vmax.f32 %v1316, %v1325
  %v1398 = vmax.f32 %v1317, %v1326
  %v1399 = vmax.f32 %v1318, %v1327
  %v1400 = vmax.f32 %v1319, %v1328
  %v1401 = vmax.f32 %v1392, %v1329
  %v1402 = vmax.f32 %v1393, %v1330
  %v1403 = vmax.f32 %v1394, %v1331
  %v1404 = vmax.f32 %v1395, %v1332
  %v1405 = vmax.f32 %v1396, %v1333
  %v1406 = vmax.f32 %v1397, %v1334
  %v1407 = vmax.f32 %v1398, %v1335
  %v1408 = vmax.f32 %v1399, %v1336
  %v1409 = vmax.f32 %v1400, %v1337
  %v1410 = vmax.f32 %v1401, %v1338
  %v1411 = vmax.f32 %v1402, %v1339
  %v1412 = vmax.f32 %v1403, %v1340
  %v1413 = vmax.f32 %v1404, %v1341
  %v1414 = vmax.f32 %v1405, %v1342
  %v1415 = vmax.f32 %v1406, %v1343
  %v1416 = vmax.f32 %v1407, %v1344
  %v1417 = vmax.f32 %v1408, %v1345
  %v1418 = vmax.f32 %v1409, %v1346
  %v1419 = vmax.f32 %v1410, %v1347
  %v1420 = vmax.f32 %v1411, %v1348
  %v1421 = vmax.f32 %v1412, %v1349
  %v1422 = vmax.f32 %v1413, %v1350
  %v1423 = vmax.f32 %v1414, %v1351
  %v1424 = vmax.f32 %v1415, %v1352
  %v1425 = vmax.f32 %v1416, %v1353
  %v1426 = vmax.f32 %v1417, %v1354
  %v1427 = vmax.f32 %v1418, %v1355
  %v1428 = vmax.f32 %v1419, %v1356
  %v1429 = vmax.f32 %v1420, %v1357
  %v1430 = vmax.f32 %v1421, %v1358
  %v1431 = vmax.f32 %v1422, %v1359
  %v1432 = vmax.f32 %v1423, %v1360
  %v1433 = vmax.f32 %v1424, %v1361
  %v1434 = vmax.f32 %v1425, %v1362
  %v1435 = vmax.f32 %v1426, %v1363
  %v1436 = vmax.f32 %v1427, %v1364
  %v1437 = vmax.f32 %v1428, %v1365
  %v1438 = vmax.f32 %v1429, %v1366
  %v1439 = vmax.f32 %v1430, %v1367
  %v1440 = vmax.f32 %v1431, %v1368
  %v1441 = vmax.f32 %v1432, %v1369
  %v1442 = vmax.f32 %v1433, %v1370
  %v1443 = vmax.f32 %v1434, %v1371
  %v1444 = vmax.f32 %v1435, %v1372
  %v1445 = vmax.f32 %v1436, %v1373
  %v1446 = vmax.f32 %v1437, %v1374
  %v1447 = vmax.f32 %v1438, %v1375
  %v1448 = vmax.f32 %v1439, %v1376
  %v1449 = vmax.f32 %v1440, %v1377
  %v1450 = vmax.f32 %v1441, %v1378
  %v1451 = vmax.f32 %v1442, %v1379
  %v1452 = vmax.f32 %v1443, %v1380
  %v1453 = vmax.f32 %v1444, %v1381
  %v1454 = vmax.f32 %v1445, %v1382
  %v1455 = vmax.f32 %v1446, %v1383
  %v1456 = vmax.f32 %v1447, %v1384
  %v1457 = vmax.f32 %v1448, %v1385
  %v1458 = vmax.f32 %v1449, %v1386
  %v1459 = vmax.f32 %v1450, %v1387
  %v1460 = vmax.f32 %v1451, %v1388
  %v1461 = vmax.f32 %v1452, %v1389
  %v1462 = vmax.f32 %v1453, %v1390
  %v1463 = vmax.f32 %v1454, %v1391
  %v1464 = vmul.f32 %v1455, 0.01
  %v1465 = vmul.f32 %v1456, 0.01
  %v1466 = vmul.f32 %v1457, 0.01
  %v1467 = vmul.f32 %v1458, 0.01
  %v1468 = vmul.f32 %v1459, 0.01
  %v1469 = vmul.f32 %v1460, 0.01
  %v1470 = vmul.f32 %v1461, 0.01
  %v1471 = vmul.f32 %v1462, 0.01
  %v1472 = vmul.f32 %v1463, 0.01
  %v1473 = vmax.f32 %v1455, %v1464
  %v1474 = vmax.f32 %v1456, %v1465
  %v1475 = vmax.f32 %v1457, %v1466
  %v1476 = vmax.f32 %v1458, %v1467
  %v1477 = vmax.f32 %v1459, %v1468
  %v1478 = vmax.f32 %v1460, %v1469
  %v1479 = vmax.f32 %v1461, %v1470
  %v1480 = vmax.f32 %v1462, %v1471
  %v1481 = vmax.f32 %v1463, %v1472
  %1482 = vst.msk [vmem:[%s3] sm:$0xff] %vm951, %v1473
  %1483 = vst.msk [vmem:[%s3 + $0x8] sm:$0xff] %vm951, %v1474
  %1484 = vst.msk [vmem:[%s3 + $0x10] sm:$0xff] %vm951, %v1475
  %1485 = vst.msk [vmem:[%s3 + $0x18] sm:$0xff] %vm951, %v1476
  %1486 = vst.msk [vmem:[%s3 + $0x20] sm:$0xff] %vm951, %v1477
  %1487 = vst.msk [vmem:[%s3 + $0x28] sm:$0xff] %vm951, %v1478
  %1488 = vst.msk [vmem:[%s3 + $0x30] sm:$0xff] %vm951, %v1479
  %1489 = vst.msk [vmem:[%s3 + $0x38] sm:$0xff] %vm951, %v1480
  %1490 = vst.msk [vmem:[%s3 + $0x40] sm:$0xff] %vm951, %v1481
  // Predicated region
  $region14: #{tpu_custom_call.1} parent=0 // pred_check
    _
  $region15: #{tpu_custom_call.1} parent=0 // pred_check_branch
    %1492 = sbr.rel (0) target = $region17
  $region16: #{tpu_custom_call.1} parent=0 // pred_region
    _
  $region17: #{tpu_custom_call.1} parent=0 // pred_fallthru
    _
  // Predicated region
  $region18: #{tpu_custom_call.1} parent=0 // pred_check
    _
  $region19: #{tpu_custom_call.1} parent=0 // pred_check_branch
    %1494 = sbr.rel (0) target = $region21
  $region20: #{tpu_custom_call.1} parent=0 // pred_region
    _
  $region21: #{tpu_custom_call.1} parent=0 // pred_fallthru
    _

</llo_original>
